<compile_context>
chip_gen: v6e
topology: v6e:2x2x1
jax: 0.10.0
libtpu: 0.0.40
codegen_flags: <defaults>
</compile_context>

<pallas_src>
import functools

import jax
import jax.numpy as jnp
from jax.experimental import pallas as pl
from jax.experimental.pallas import tpu as pltpu

SIZE = 0  # stand-in for the undefined `size` in the reference


def _slice_end(c1, c2, h, w):
    # Channel extent of x5 = x3[:, 0 : c1*h*w - SIZE] with PyTorch clamping.
    # (The end is an *element count* used as a channel index — this mirrors
    # the reference semantics on purpose; do not "fix" it.)
    return max(0, min(c1 * h * w - SIZE, c1 + c2))


# ---------------------------------------------------------------------------
# Main path: pure HBM->HBM DMA.  Refs are whole arrays in pl.ANY space.
#   x1_ref: (N, C1, HW)   x2_ref: (N, C2, HW)   o_ref: (N, C1+C2+se, HW)
# ---------------------------------------------------------------------------
def _dma_kernel(x1_ref, x2_ref, o_ref, sem, *, c1, c2, se):
    c3 = c1 + c2
    n1 = min(se, c1)       # slice rows coming from x1
    n2 = se - n1           # slice rows coming from x2
    copies = [
        pltpu.make_async_copy(x1_ref, o_ref.at[:, 0:c1, :], sem.at[0]),
        pltpu.make_async_copy(x2_ref, o_ref.at[:, c1:c3, :], sem.at[1]),
    ]
    if n1 > 0:
        copies.append(pltpu.make_async_copy(
            x1_ref.at[:, 0:n1, :], o_ref.at[:, c3:c3 + n1, :], sem.at[2]))
    if n2 > 0:
        copies.append(pltpu.make_async_copy(
            x2_ref.at[:, 0:n2, :], o_ref.at[:, c3 + n1:c3 + se, :], sem.at[3]))
    # Issue everything first so the DMA engines overlap, then wait.
    for cp in copies:
        cp.start()
    for cp in copies:
        cp.wait()


def _dma_path(x1f, x2f, *, n, c1, c2, se, hw):
    c_out = c1 + c2 + se
    itemsize = jnp.dtype(x1f.dtype).itemsize
    bytes_accessed = 2 * n * c_out * hw * itemsize  # read + write per out elem
    return pl.pallas_call(
        functools.partial(_dma_kernel, c1=c1, c2=c2, se=se),
        out_shape=jax.ShapeDtypeStruct((n, c_out, hw), x1f.dtype),
        in_specs=[pl.BlockSpec(memory_space=pl.ANY),
                  pl.BlockSpec(memory_space=pl.ANY)],
        out_specs=pl.BlockSpec(memory_space=pl.ANY),
        scratch_shapes=[pltpu.SemaphoreType.DMA((4,))],
        cost_estimate=pl.CostEstimate(flops=0, transcendentals=0,
                                      bytes_accessed=bytes_accessed),
    )(x1f, x2f)


# ---------------------------------------------------------------------------
# Fallback path (only used if local HBM->HBM DMA is rejected): per-batch
# whole-slab VMEM copy in (C, HW) layout.  Correctness-first.
# ---------------------------------------------------------------------------
def _vmem_kernel(x1_ref, x2_ref, o_ref, *, c1, c2, se):
    c3 = c1 + c2
    o_ref[0:c1, :] = x1_ref[...]
    o_ref[c1:c3, :] = x2_ref[...]
    n1 = min(se, c1)
    if n1 > 0:
        o_ref[c3:c3 + n1, :] = x1_ref[0:n1, :]
    if se > c1:
        o_ref[c3 + n1:c3 + se, :] = x2_ref[0:se - c1, :]


def _vmem_path(x1f, x2f, *, n, c1, c2, se, hw):
    c_out = c1 + c2 + se
    itemsize = jnp.dtype(x1f.dtype).itemsize
    blk_bytes = (c1 + c2 + c_out) * hw * itemsize      # one batch, in + out
    vmem_limit = int(min(100 * 2**20, max(32 * 2**20, 3 * blk_bytes)))
    bytes_accessed = 2 * n * c_out * hw * itemsize
    return pl.pallas_call(
        functools.partial(_vmem_kernel, c1=c1, c2=c2, se=se),
        out_shape=jax.ShapeDtypeStruct((n, c_out, hw), x1f.dtype),
        grid=(n,),
        in_specs=[pl.BlockSpec((None, c1, hw), lambda b: (b, 0, 0)),
                  pl.BlockSpec((None, c2, hw), lambda b: (b, 0, 0))],
        out_specs=pl.BlockSpec((None, c_out, hw), lambda b: (b, 0, 0)),
        compiler_params=pltpu.CompilerParams(
            dimension_semantics=("parallel",),
            vmem_limit_bytes=vmem_limit),
        cost_estimate=pl.CostEstimate(flops=0, transcendentals=0,
                                      bytes_accessed=bytes_accessed),
    )(x1f, x2f)


_USE_DMA = True        # flips to False if the HBM->HBM DMA path ever fails
_DMA_VALIDATED = False


def cat_slice_cat(x1, x2):
    """x1: (N, C1, H, W), x2: (N, C2, H, W) -> (N, C1+C2+slice_end, H, W)."""
    global _USE_DMA, _DMA_VALIDATED
    n, c1, h, w = x1.shape
    n2_, c2, h2, w2 = x2.shape
    assert (n, h, w) == (n2_, h2, w2), "batch/spatial dims must match for cat"
    assert x1.dtype == x2.dtype
    hw = h * w
    se = _slice_end(c1, c2, h, w)
    c_out = c1 + c2 + se

    x1f = x1.reshape(n, c1, hw)
    x2f = x2.reshape(n, c2, hw)
    kw = dict(n=n, c1=c1, c2=c2, se=se, hw=hw)

    if _USE_DMA:
        try:
            out = _dma_path(x1f, x2f, **kw)
            if not _DMA_VALIDATED:        # block once to surface runtime errors
                jax.block_until_ready(out)
                _DMA_VALIDATED = True
            return out.reshape(n, c_out, h, w)
        except Exception:
            _USE_DMA = False              # fall back permanently

    out = _vmem_path(x1f, x2f, **kw)
    return out.reshape(n, c_out, h, w)


def _reference(x1, x2):
    c1, h, w = x1.shape[1], x1.shape[2], x1.shape[3]
    x3 = jnp.concatenate([x1, x2], axis=1)
    end = max(0, min(c1 * h * w - SIZE, x3.shape[1]))
    return jnp.concatenate([x3, x3[:, 0:end]], axis=1)


if __name__ == "__main__":
    key = jax.random.PRNGKey(0)
    k1, k2, k3, k4, k5, k6 = jax.random.split(key, 6)

    # Small version of the module's shapes (ref: x1 (1,3,64,64), x2 (1,64,64,64)).
    a1 = jax.random.normal(k1, (2, 3, 16, 16), dtype=jnp.float32)
    a2 = jax.random.normal(k2, (2, 13, 16, 16), dtype=jnp.float32)
    out_a = jax.block_until_ready(cat_slice_cat(a1, a2))
    exp_a = _reference(a1, a2)
    assert out_a.shape == exp_a.shape, (out_a.shape, exp_a.shape)
    assert bool(jnp.array_equal(out_a, exp_a)), "full-duplication case mismatch"

    # Non-lane-aligned spatial size (H*W = 12*16 = 192).
    b1 = jax.random.normal(k3, (1, 3, 12, 16), dtype=jnp.float32)
    b2 = jax.random.normal(k4, (1, 8, 12, 16), dtype=jnp.float32)
    out_b = jax.block_until_ready(cat_slice_cat(b1, b2))
    exp_b = _reference(b1, b2)
    assert out_b.shape == exp_b.shape, (out_b.shape, exp_b.shape)
    assert bool(jnp.array_equal(out_b, exp_b)), "non-aligned case mismatch"

    # Degenerate partial-slice case: c1*h*w (=8) < c1+c2 (=12) -> se = 8 < c3.
    c1_ = jax.random.normal(k5, (1, 2, 2, 2), dtype=jnp.float32)
    c2_ = jax.random.normal(k6, (1, 10, 2, 2), dtype=jnp.float32)
    out_c = jax.block_until_ready(cat_slice_cat(c1_, c2_))
    exp_c = _reference(c1_, c2_)
    assert out_c.shape == exp_c.shape, (out_c.shape, exp_c.shape)
    assert bool(jnp.array_equal(out_c, exp_c)), "partial-slice case mismatch"

    print("KERNEL_OK")
</pallas_src>

<mosaic_0001>
module attributes {stable_mosaic.version = 11 : i64} {
  func.func @_dma_kernel(%arg0: memref<2x3x256xf32, #tpu.memory_space<any>>, %arg1: memref<2x13x256xf32, #tpu.memory_space<any>>, %arg2: memref<2x32x256xf32, #tpu.memory_space<any>>, %arg3: memref<4x!tpu.dma_semaphore, #tpu.memory_space<semaphore_mem>>) attributes {dimension_semantics = [], scalar_prefetch = 0 : i64, scratch_operands = 1 : i64, tpu.core_type = #tpu.core_type<tc>} {
    %c0_i32 = arith.constant 0 : i32
    %c0_i32_0 = arith.constant 0 : i32
    %c0_i32_1 = arith.constant 0 : i32
    %c0_i32_2 = arith.constant 0 : i32
    %0 = tpu.memref_slice %arg2[%c0_i32_0, %c0_i32_1, %c0_i32_2] : memref<2x32x256xf32, #tpu.memory_space<any>> -> memref<2x3x256xf32, #tpu.memory_space<any>>
    %1 = tpu.memref_slice %arg3[%c0_i32] : memref<4x!tpu.dma_semaphore, #tpu.memory_space<semaphore_mem>> -> memref<1x!tpu.dma_semaphore, #tpu.memory_space<semaphore_mem>>
    %2 = tpu.memref_squeeze %1 : memref<1x!tpu.dma_semaphore, #tpu.memory_space<semaphore_mem>> -> memref<!tpu.dma_semaphore, #tpu.memory_space<semaphore_mem>>
    tpu.enqueue_dma source(%arg0 : memref<2x3x256xf32, #tpu.memory_space<any>>) target(%0 : memref<2x3x256xf32, #tpu.memory_space<any>>) target_semaphore(%2 : memref<!tpu.dma_semaphore, #tpu.memory_space<semaphore_mem>>)
    %c1_i32 = arith.constant 1 : i32
    %c0_i32_3 = arith.constant 0 : i32
    %c3_i32 = arith.constant 3 : i32
    %c0_i32_4 = arith.constant 0 : i32
    %3 = tpu.memref_slice %arg2[%c0_i32_3, %c3_i32, %c0_i32_4] : memref<2x32x256xf32, #tpu.memory_space<any>> -> memref<2x13x256xf32, #tpu.memory_space<any>>
    %4 = tpu.memref_slice %arg3[%c1_i32] : memref<4x!tpu.dma_semaphore, #tpu.memory_space<semaphore_mem>> -> memref<1x!tpu.dma_semaphore, #tpu.memory_space<semaphore_mem>>
    %5 = tpu.memref_squeeze %4 : memref<1x!tpu.dma_semaphore, #tpu.memory_space<semaphore_mem>> -> memref<!tpu.dma_semaphore, #tpu.memory_space<semaphore_mem>>
    tpu.enqueue_dma source(%arg1 : memref<2x13x256xf32, #tpu.memory_space<any>>) target(%3 : memref<2x13x256xf32, #tpu.memory_space<any>>) target_semaphore(%5 : memref<!tpu.dma_semaphore, #tpu.memory_space<semaphore_mem>>)
    %c2_i32 = arith.constant 2 : i32
    %c0_i32_5 = arith.constant 0 : i32
    %c0_i32_6 = arith.constant 0 : i32
    %c0_i32_7 = arith.constant 0 : i32
    %6 = tpu.memref_slice %arg0[%c0_i32_5, %c0_i32_6, %c0_i32_7] : memref<2x3x256xf32, #tpu.memory_space<any>> -> memref<2x3x256xf32, #tpu.memory_space<any>>
    %c0_i32_8 = arith.constant 0 : i32
    %c16_i32 = arith.constant 16 : i32
    %c0_i32_9 = arith.constant 0 : i32
    %7 = tpu.memref_slice %arg2[%c0_i32_8, %c16_i32, %c0_i32_9] : memref<2x32x256xf32, #tpu.memory_space<any>> -> memref<2x3x256xf32, #tpu.memory_space<any>>
    %8 = tpu.memref_slice %arg3[%c2_i32] : memref<4x!tpu.dma_semaphore, #tpu.memory_space<semaphore_mem>> -> memref<1x!tpu.dma_semaphore, #tpu.memory_space<semaphore_mem>>
    %9 = tpu.memref_squeeze %8 : memref<1x!tpu.dma_semaphore, #tpu.memory_space<semaphore_mem>> -> memref<!tpu.dma_semaphore, #tpu.memory_space<semaphore_mem>>
    tpu.enqueue_dma source(%6 : memref<2x3x256xf32, #tpu.memory_space<any>>) target(%7 : memref<2x3x256xf32, #tpu.memory_space<any>>) target_semaphore(%9 : memref<!tpu.dma_semaphore, #tpu.memory_space<semaphore_mem>>)
    %c3_i32_10 = arith.constant 3 : i32
    %c0_i32_11 = arith.constant 0 : i32
    %c0_i32_12 = arith.constant 0 : i32
    %c0_i32_13 = arith.constant 0 : i32
    %10 = tpu.memref_slice %arg1[%c0_i32_11, %c0_i32_12, %c0_i32_13] : memref<2x13x256xf32, #tpu.memory_space<any>> -> memref<2x13x256xf32, #tpu.memory_space<any>>
    %c0_i32_14 = arith.constant 0 : i32
    %c19_i32 = arith.constant 19 : i32
    %c0_i32_15 = arith.constant 0 : i32
    %11 = tpu.memref_slice %arg2[%c0_i32_14, %c19_i32, %c0_i32_15] : memref<2x32x256xf32, #tpu.memory_space<any>> -> memref<2x13x256xf32, #tpu.memory_space<any>>
    %12 = tpu.memref_slice %arg3[%c3_i32_10] : memref<4x!tpu.dma_semaphore, #tpu.memory_space<semaphore_mem>> -> memref<1x!tpu.dma_semaphore, #tpu.memory_space<semaphore_mem>>
    %13 = tpu.memref_squeeze %12 : memref<1x!tpu.dma_semaphore, #tpu.memory_space<semaphore_mem>> -> memref<!tpu.dma_semaphore, #tpu.memory_space<semaphore_mem>>
    tpu.enqueue_dma source(%10 : memref<2x13x256xf32, #tpu.memory_space<any>>) target(%11 : memref<2x13x256xf32, #tpu.memory_space<any>>) target_semaphore(%13 : memref<!tpu.dma_semaphore, #tpu.memory_space<semaphore_mem>>)
    %c0_i32_16 = arith.constant 0 : i32
    %c0_i32_17 = arith.constant 0 : i32
    %c0_i32_18 = arith.constant 0 : i32
    %c0_i32_19 = arith.constant 0 : i32
    %14 = tpu.memref_slice %arg2[%c0_i32_17, %c0_i32_18, %c0_i32_19] : memref<2x32x256xf32, #tpu.memory_space<any>> -> memref<2x3x256xf32, #tpu.memory_space<any>>
    %15 = tpu.memref_slice %arg3[%c0_i32_16] : memref<4x!tpu.dma_semaphore, #tpu.memory_space<semaphore_mem>> -> memref<1x!tpu.dma_semaphore, #tpu.memory_space<semaphore_mem>>
    %16 = tpu.memref_squeeze %15 : memref<1x!tpu.dma_semaphore, #tpu.memory_space<semaphore_mem>> -> memref<!tpu.dma_semaphore, #tpu.memory_space<semaphore_mem>>
    tpu.wait_dma2 semaphore(%16 : memref<!tpu.dma_semaphore, #tpu.memory_space<semaphore_mem>>) src(%arg0 : memref<2x3x256xf32, #tpu.memory_space<any>>) dst(%14 : memref<2x3x256xf32, #tpu.memory_space<any>>)
    %c1_i32_20 = arith.constant 1 : i32
    %c0_i32_21 = arith.constant 0 : i32
    %c3_i32_22 = arith.constant 3 : i32
    %c0_i32_23 = arith.constant 0 : i32
    %17 = tpu.memref_slice %arg2[%c0_i32_21, %c3_i32_22, %c0_i32_23] : memref<2x32x256xf32, #tpu.memory_space<any>> -> memref<2x13x256xf32, #tpu.memory_space<any>>
    %18 = tpu.memref_slice %arg3[%c1_i32_20] : memref<4x!tpu.dma_semaphore, #tpu.memory_space<semaphore_mem>> -> memref<1x!tpu.dma_semaphore, #tpu.memory_space<semaphore_mem>>
    %19 = tpu.memref_squeeze %18 : memref<1x!tpu.dma_semaphore, #tpu.memory_space<semaphore_mem>> -> memref<!tpu.dma_semaphore, #tpu.memory_space<semaphore_mem>>
    tpu.wait_dma2 semaphore(%19 : memref<!tpu.dma_semaphore, #tpu.memory_space<semaphore_mem>>) src(%arg1 : memref<2x13x256xf32, #tpu.memory_space<any>>) dst(%17 : memref<2x13x256xf32, #tpu.memory_space<any>>)
    %c2_i32_24 = arith.constant 2 : i32
    %c0_i32_25 = arith.constant 0 : i32
    %c0_i32_26 = arith.constant 0 : i32
    %c0_i32_27 = arith.constant 0 : i32
    %20 = tpu.memref_slice %arg0[%c0_i32_25, %c0_i32_26, %c0_i32_27] : memref<2x3x256xf32, #tpu.memory_space<any>> -> memref<2x3x256xf32, #tpu.memory_space<any>>
    %c0_i32_28 = arith.constant 0 : i32
    %c16_i32_29 = arith.constant 16 : i32
    %c0_i32_30 = arith.constant 0 : i32
    %21 = tpu.memref_slice %arg2[%c0_i32_28, %c16_i32_29, %c0_i32_30] : memref<2x32x256xf32, #tpu.memory_space<any>> -> memref<2x3x256xf32, #tpu.memory_space<any>>
    %22 = tpu.memref_slice %arg3[%c2_i32_24] : memref<4x!tpu.dma_semaphore, #tpu.memory_space<semaphore_mem>> -> memref<1x!tpu.dma_semaphore, #tpu.memory_space<semaphore_mem>>
    %23 = tpu.memref_squeeze %22 : memref<1x!tpu.dma_semaphore, #tpu.memory_space<semaphore_mem>> -> memref<!tpu.dma_semaphore, #tpu.memory_space<semaphore_mem>>
    tpu.wait_dma2 semaphore(%23 : memref<!tpu.dma_semaphore, #tpu.memory_space<semaphore_mem>>) src(%20 : memref<2x3x256xf32, #tpu.memory_space<any>>) dst(%21 : memref<2x3x256xf32, #tpu.memory_space<any>>)
    %c3_i32_31 = arith.constant 3 : i32
    %c0_i32_32 = arith.constant 0 : i32
    %c0_i32_33 = arith.constant 0 : i32
    %c0_i32_34 = arith.constant 0 : i32
    %24 = tpu.memref_slice %arg1[%c0_i32_32, %c0_i32_33, %c0_i32_34] : memref<2x13x256xf32, #tpu.memory_space<any>> -> memref<2x13x256xf32, #tpu.memory_space<any>>
    %c0_i32_35 = arith.constant 0 : i32
    %c19_i32_36 = arith.constant 19 : i32
    %c0_i32_37 = arith.constant 0 : i32
    %25 = tpu.memref_slice %arg2[%c0_i32_35, %c19_i32_36, %c0_i32_37] : memref<2x32x256xf32, #tpu.memory_space<any>> -> memref<2x13x256xf32, #tpu.memory_space<any>>
    %26 = tpu.memref_slice %arg3[%c3_i32_31] : memref<4x!tpu.dma_semaphore, #tpu.memory_space<semaphore_mem>> -> memref<1x!tpu.dma_semaphore, #tpu.memory_space<semaphore_mem>>
    %27 = tpu.memref_squeeze %26 : memref<1x!tpu.dma_semaphore, #tpu.memory_space<semaphore_mem>> -> memref<!tpu.dma_semaphore, #tpu.memory_space<semaphore_mem>>
    tpu.wait_dma2 semaphore(%27 : memref<!tpu.dma_semaphore, #tpu.memory_space<semaphore_mem>>) src(%24 : memref<2x13x256xf32, #tpu.memory_space<any>>) dst(%25 : memref<2x13x256xf32, #tpu.memory_space<any>>)
    return
  }
}

module attributes {stable_mosaic.version = 11 : i64} {
  func.func @_vmem_kernel(%arg0: i32, %arg1: memref<1x3x256xf32, #tpu.memory_space<vmem>>, %arg2: memref<1x13x256xf32, #tpu.memory_space<vmem>>, %arg3: memref<1x32x256xf32, #tpu.memory_space<vmem>>) attributes {dimension_semantics = [#tpu.dimension_semantics<parallel>], iteration_bounds = array<i64: 2>, scalar_prefetch = 0 : i64, scratch_operands = 0 : i64, tpu.core_type = #tpu.core_type<tc>, window_params = [{transform_indices = @transform_0, window_bounds = array<i64: 1, 3, 256>}, {transform_indices = @transform_1, window_bounds = array<i64: 1, 13, 256>}, {transform_indices = @transform_2, window_bounds = array<i64: 1, 32, 256>}]} {
    %c0 = arith.constant 0 : index
    %c0_0 = arith.constant 0 : index
    %c0_1 = arith.constant 0 : index
    %0 = vector.load %arg1[%c0, %c0_0, %c0_1] : memref<1x3x256xf32, #tpu.memory_space<vmem>>, vector<1x3x256xf32>
    %1 = vector.shape_cast %0 : vector<1x3x256xf32> to vector<3x256xf32>
    %c0_2 = arith.constant 0 : index
    %c0_3 = arith.constant 0 : index
    %c0_4 = arith.constant 0 : index
    %2 = vector.load %arg3[%c0_2, %c0_3, %c0_4] : memref<1x32x256xf32, #tpu.memory_space<vmem>>, vector<1x3x256xf32>
    %3 = vector.shape_cast %2 : vector<1x3x256xf32> to vector<3x256xf32>
    %4 = vector.shape_cast %1 : vector<3x256xf32> to vector<1x3x256xf32>
    tpu.vector_store %arg3[%c0_2, %c0_3, %c0_4], %4 {strides = array<i32>} : memref<1x32x256xf32, #tpu.memory_space<vmem>>, vector<1x3x256xf32>,
    %c0_5 = arith.constant 0 : index
    %c0_6 = arith.constant 0 : index
    %c0_7 = arith.constant 0 : index
    %5 = vector.load %arg2[%c0_5, %c0_6, %c0_7] : memref<1x13x256xf32, #tpu.memory_space<vmem>>, vector<1x13x256xf32>
    %6 = vector.shape_cast %5 : vector<1x13x256xf32> to vector<13x256xf32>
    %c0_8 = arith.constant 0 : index
    %c3 = arith.constant 3 : index
    %c0_9 = arith.constant 0 : index
    %7 = vector.load %arg3[%c0_8, %c3, %c0_9] : memref<1x32x256xf32, #tpu.memory_space<vmem>>, vector<1x13x256xf32>
    %8 = vector.shape_cast %7 : vector<1x13x256xf32> to vector<13x256xf32>
    %9 = vector.shape_cast %6 : vector<13x256xf32> to vector<1x13x256xf32>
    tpu.vector_store %arg3[%c0_8, %c3, %c0_9], %9 {strides = array<i32>} : memref<1x32x256xf32, #tpu.memory_space<vmem>>, vector<1x13x256xf32>,
    %c0_10 = arith.constant 0 : index
    %c0_11 = arith.constant 0 : index
    %c0_12 = arith.constant 0 : index
    %10 = vector.load %arg1[%c0_10, %c0_11, %c0_12] : memref<1x3x256xf32, #tpu.memory_space<vmem>>, vector<1x3x256xf32>
    %11 = vector.shape_cast %10 : vector<1x3x256xf32> to vector<3x256xf32>
    %c0_13 = arith.constant 0 : index
    %c16 = arith.constant 16 : index
    %c0_14 = arith.constant 0 : index
    %12 = vector.load %arg3[%c0_13, %c16, %c0_14] : memref<1x32x256xf32, #tpu.memory_space<vmem>>, vector<1x3x256xf32>
    %13 = vector.shape_cast %12 : vector<1x3x256xf32> to vector<3x256xf32>
    %14 = vector.shape_cast %11 : vector<3x256xf32> to vector<1x3x256xf32>
    tpu.vector_store %arg3[%c0_13, %c16, %c0_14], %14 {strides = array<i32>} : memref<1x32x256xf32, #tpu.memory_space<vmem>>, vector<1x3x256xf32>,
    %c0_15 = arith.constant 0 : index
    %c0_16 = arith.constant 0 : index
    %c0_17 = arith.constant 0 : index
    %15 = vector.load %arg2[%c0_15, %c0_16, %c0_17] : memref<1x13x256xf32, #tpu.memory_space<vmem>>, vector<1x13x256xf32>
    %16 = vector.shape_cast %15 : vector<1x13x256xf32> to vector<13x256xf32>
    %c0_18 = arith.constant 0 : index
    %c19 = arith.constant 19 : index
    %c0_19 = arith.constant 0 : index
    %17 = vector.load %arg3[%c0_18, %c19, %c0_19] : memref<1x32x256xf32, #tpu.memory_space<vmem>>, vector<1x13x256xf32>
    %18 = vector.shape_cast %17 : vector<1x13x256xf32> to vector<13x256xf32>
    %19 = vector.shape_cast %16 : vector<13x256xf32> to vector<1x13x256xf32>
    tpu.vector_store %arg3[%c0_18, %c19, %c0_19], %19 {strides = array<i32>} : memref<1x32x256xf32, #tpu.memory_space<vmem>>, vector<1x13x256xf32>,
    return
  }
  func.func @transform_0(%arg0: i32) -> (i32, i32, i32) {
    %c0_i32 = arith.constant 0 : i32
    %c0_i32_0 = arith.constant 0 : i32
    %c0_i32_1 = arith.constant 0 : i32
    return %arg0, %c0_i32, %c0_i32_0 : i32, i32, i32
  }
  func.func @transform_1(%arg0: i32) -> (i32, i32, i32) {
    %c0_i32 = arith.constant 0 : i32
    %c0_i32_0 = arith.constant 0 : i32
    %c0_i32_1 = arith.constant 0 : i32
    return %arg0, %c0_i32, %c0_i32_0 : i32, i32, i32
  }
  func.func @transform_2(%arg0: i32) -> (i32, i32, i32) {
    %c0_i32 = arith.constant 0 : i32
    %c0_i32_0 = arith.constant 0 : i32
    %c0_i32_1 = arith.constant 0 : i32
    return %arg0, %c0_i32, %c0_i32_0 : i32, i32, i32
  }
}

</mosaic_0001>

<llo_original>
// kernel: tpu_custom_call.1
$region0: #{tpu_custom_call.1}
  #allocation0 [shape = 'u32[]', space=smem, size = 0x4, offset = 0x4, fixed_abs, tag = 'smem constant byte address 0x4 - core index']
  #allocation1 [shape = 'u32[144,128]{1,0:T(1,128)}', space=vmem, size = 0x12000, scoped, tag = 'internal scratch']
  %s0 = inlined_call_operand.vmem [shape: f32[2,3,256], index: 0, kind: input, shape index: {}]
  %s1 = inlined_call_operand.vmem [shape: f32[2,13,256], index: 1, kind: input, shape index: {}]
  %s2 = inlined_call_operand.hbm [shape: f32[2,32,256], index: 2, kind: output, shape index: {}]
  %s3 = sld [smem:[#allocation0]]
  $region41: #{tpu_custom_call.1} parent=0
    _
  %s5 = ssub.s32 1, %s3
  %s6 = scalar_select 0, %s5, %s3
  $region1: #{tpu_custom_call.1} parent=0
    #allocation2 [shape = 'u8[65536]{0}', space=vmem, size = 0x10000, scoped, tag = 'output window, operand 0']
    #allocation3 [shape = 's32[2]{0}', space=sflag, size = 0x8, scoped, tag = 'scoped memory for tpu_custom_call.1']
    %7 = vsyncpa [#allocation3], 0
    %s8 = scalar_lea.sflag [#allocation3], 1
    %9 = vsyncpa %s8, 0
    loop: start=0, step=1, limit=4
    $region2: #{tpu_custom_call.1} parent=1 // loop_pre_header
      _
    $region3: #{tpu_custom_call.1} parent=1 // loop_header
      %s11 = sphi 0, %s15
      %p12 = scmp.ge.s32.totalorder %s11, 4
      %s21 = sphi 0, %s23
      %s24 = sphi 0, %s21
      %s25 = sphi 0, %s24
      %s41 = sphi 0, %s25
      %s47 = sphi 0, %s49
      %s50 = sphi 0, %s47
      %s51 = sphi 0, %s50
      %s67 = sphi 0, %s51
      %s73 = sphi 0, %s75
      %s76 = sphi 0, %s73
      %s77 = sphi 0, %s76
      %s93 = sphi 0, %s77
    $region4: #{tpu_custom_call.1} parent=1 // loop_header_branch
      %14 = sbr.rel (%p12) target = $region8
    $region5: #{tpu_custom_call.1} parent=1 // loop_body
      %s16 = ssub.s32 %s11, 1
      %s17 = ssub.s32 %s11, 2
      %s18 = sadd.s32 %s11, 1
      %s19 = ssub.s32 %s11, %s18
      %p20 = scmp.eq.s32.totalorder %s19, 0
      %s22 = sadd.s32 %s21, 1
      %s23 = scalar_select %p20, %s21, %s22
      %p26 = pneg %p20
      %p27 = scmp.eq.s32.totalorder %s11, 1
      %p28 = por %p26, %p27
      %p29 = scmp.ne.s32.totalorder %s21, %s24
      %p30 = scmp.eq.s32.totalorder %s11, 0
      %p31 = por %p29, %p30
      %p32 = scmp.ne.s32.totalorder %s21, %s24
      %p33 = scmp.eq.s32.totalorder %s16, 1
      %p34 = por %p32, %p33
      %p35 = scmp.ne.s32.totalorder %s24, %s25
      %p36 = scmp.eq.s32.totalorder %s16, 0
      %p37 = por %p35, %p36
      %p38 = scmp.ne.s32.totalorder %s24, %s25
      %p39 = scmp.eq.s32.totalorder %s17, 1
      %p40 = por %p38, %p39
      %p42 = scmp.ne.s32.totalorder %s25, %s41
      %p43 = scmp.eq.s32.totalorder %s17, 0
      %p44 = por %p42, %p43
      %s45 = ssub.s32 %s11, %s18
      %p46 = scmp.eq.s32.totalorder %s45, 0
      %s48 = sadd.s32 %s47, 1
      %s49 = scalar_select %p46, %s47, %s48
      %p52 = pneg %p46
      %p53 = scmp.eq.s32.totalorder %s11, 1
      %p54 = por %p52, %p53
      %p55 = scmp.ne.s32.totalorder %s47, %s50
      %p56 = scmp.eq.s32.totalorder %s11, 0
      %p57 = por %p55, %p56
      %p58 = scmp.ne.s32.totalorder %s47, %s50
      %p59 = scmp.eq.s32.totalorder %s16, 1
      %p60 = por %p58, %p59
      %p61 = scmp.ne.s32.totalorder %s50, %s51
      %p62 = scmp.eq.s32.totalorder %s16, 0
      %p63 = por %p61, %p62
      %p64 = scmp.ne.s32.totalorder %s50, %s51
      %p65 = scmp.eq.s32.totalorder %s17, 1
      %p66 = por %p64, %p65
      %p68 = scmp.ne.s32.totalorder %s51, %s67
      %p69 = scmp.eq.s32.totalorder %s17, 0
      %p70 = por %p68, %p69
      %s71 = ssub.s32 %s11, %s18
      %p72 = scmp.eq.s32.totalorder %s71, 0
      %s74 = sadd.s32 %s73, 1
      %s75 = scalar_select %p72, %s73, %s74
      %p78 = pneg %p72
      %p79 = scmp.eq.s32.totalorder %s11, 1
      %p80 = por %p78, %p79
      %p81 = scmp.ne.s32.totalorder %s73, %s76
      %p82 = scmp.eq.s32.totalorder %s11, 0
      %p83 = por %p81, %p82
      %p84 = scmp.ne.s32.totalorder %s73, %s76
      %p85 = scmp.eq.s32.totalorder %s16, 1
      %p86 = por %p84, %p85
      %p87 = scmp.ne.s32.totalorder %s76, %s77
      %p88 = scmp.eq.s32.totalorder %s16, 0
      %p89 = por %p87, %p88
      %p90 = scmp.ne.s32.totalorder %s76, %s77
      %p91 = scmp.eq.s32.totalorder %s17, 1
      %p92 = por %p90, %p91
      %p94 = scmp.ne.s32.totalorder %s77, %s93
      %p95 = scmp.eq.s32.totalorder %s17, 0
      %p96 = por %p94, %p95
      %p97 = scmp.le.s32.totalorder 1, %s11
      %p98 = scmp.lt.s32.totalorder %s11, 3
      %p99 = pnand %p97, %p98
      %p100 = pneg %p99
      // Predicated region
      $region9: #{tpu_custom_call.1} parent=5 // pred_check
        _
      $region10: #{tpu_custom_call.1} parent=5 // pred_check_branch
        %102 = sbr.rel (%p99) target = $region12
      $region11: #{tpu_custom_call.1} parent=5 // pred_region
        %s103 = ssub.s32 %s11, 1
      $region12: #{tpu_custom_call.1} parent=5 // pred_fallthru
        _
      %p104 = scmp.lt.s32.totalorder %s11, 2
      // Predicated region
      $region13: #{tpu_custom_call.1} parent=5 // pred_check
        %p105 = pneg %p104
      $region14: #{tpu_custom_call.1} parent=5 // pred_check_branch
        %107 = sbr.rel (%p105) target = $region16
      $region15: #{tpu_custom_call.1} parent=5 // pred_region
        // Predicated region
        $region17: #{tpu_custom_call.1} parent=15 // pred_check
          %p108 = pneg %p31
        $region18: #{tpu_custom_call.1} parent=15 // pred_check_branch
          %110 = sbr.rel (%p108) target = $region20
        $region19: #{tpu_custom_call.1} parent=15 // pred_region
          %p111 = scmp.lt.s32.totalorder %s11, 1
          %s112 = scalar_select %p111, %s11, 1
          %s113 = smul.addr %s112, 2
          %s114 = smul.addr %s113, 4
          %s115 = scalar_lea.vmem %s0, %s114
        $region20: #{tpu_custom_call.1} parent=15 // pred_fallthru
          _
        // Predicated region
        $region21: #{tpu_custom_call.1} parent=15 // pred_check
          %p116 = pneg %p57
        $region22: #{tpu_custom_call.1} parent=15 // pred_check_branch
          %118 = sbr.rel (%p116) target = $region24
        $region23: #{tpu_custom_call.1} parent=15 // pred_region
          %p119 = scmp.lt.s32.totalorder %s11, 1
          %s120 = scalar_select %p119, %s11, 1
          %s121 = smul.addr %s120, 4
          %s122 = smul.addr %s121, 8
          %s123 = scalar_lea.vmem %s1, %s122
        $region24: #{tpu_custom_call.1} parent=15 // pred_fallthru
          _
      $region16: #{tpu_custom_call.1} parent=5 // pred_fallthru
        _
      %p124 = scmp.le.s32.totalorder 1, %s11
      %p125 = scmp.lt.s32.totalorder %s11, 3
      %p126 = pnand %p124, %p125
      %p127 = pneg %p126
      // Predicated region
      $region25: #{tpu_custom_call.1} parent=5 // pred_check
        _
      $region26: #{tpu_custom_call.1} parent=5 // pred_check_branch
        %129 = sbr.rel (%p126) target = $region28
      $region27: #{tpu_custom_call.1} parent=5 // pred_region
        %s130 = ssub.s32 %s11, 1
        %p131 = scmp.lt.s32.totalorder %s16, 1
        %s132 = scalar_select %p131, %s16, 1
        %s133 = smul.addr %s132, 2
        %s134 = smul.addr %s133, 4
        %s135 = scalar_lea.vmem %s0, %s134
        %p136 = pneg %p37
        %p137 = pneg %p34
        %p138 = scmp.lt.s32.totalorder %s16, 1
        %s139 = scalar_select %p138, %s16, 1
        %s140 = smul.addr %s139, 4
        %s141 = smul.addr %s140, 8
        %s142 = scalar_lea.vmem %s1, %s141
        %p143 = pneg %p63
        %p144 = pneg %p60
        %p145 = pneg %p89
        %p146 = pneg %p86
        %s147 = sand.u32 %s76, 1
        %s148 = scalar_lea.sflag [#allocation3], %s147
        %s149 = sand.u32 %s76, 1
        %s150 = smul.addr %s149, 64
        %s151 = scalar_lea.vmem [#allocation2], %s150
        %p152 = scmp.lt.s32.totalorder %s16, 1
        %s153 = scalar_select %p152, %s16, 1
        %s154 = smul.addr %s153, 2
        %s155 = smul.addr %s154, 4
        %s156 = scalar_lea.vmem %s0, %s155
        %p157 = scmp.lt.s32.totalorder %s16, 1
        %s158 = scalar_select %p157, %s16, 1
        %s159 = smul.addr %s158, 4
        %s160 = smul.addr %s159, 8
        %s161 = scalar_lea.vmem %s1, %s160
        %v162 = vld [vmem:[%s156] sm:$0x77]
        %v164 = vcombine.high %v162, %v162
        %166 = vst [vmem:[%s151] sm:$0x7] %v162
        %167 = vst [vmem:[%s151 + $0x8] sm:$0x7] %v164
        %v168 = vld [vmem:[%s161] sm:$0xff]
        %v169 = vld [vmem:[%s161 + $0x8] sm:$0xff]
        %v170 = vld [vmem:[%s161 + $0x10] sm:$0x1f]
        %v171 = vld [vmem:[%s161 + $0x18] sm:$0x1f]
        %vm176 = vcmask 1042432
        %v177 = vrot.slane %v168, 5
        %v178 = vrot.slane %v169, 5
        %v179 = vrot.slane %v170, 5
        %v180 = vsel %vm176, %v177, %v179
        %v181 = vrot.slane %v171, 5
        %v182 = vsel %vm176, %v178, %v181
        %187 = vst [vmem:[%s151] sm:$0xf8] %v177
        %188 = vst [vmem:[%s151 + $0x8] sm:$0xf8] %v178
        %189 = vst [vmem:[%s151 + $0x10] sm:$0xff] %v180
        %190 = vst [vmem:[%s151 + $0x18] sm:$0xff] %v182
        %v191 = vld [vmem:[%s156] sm:$0x77]
        %v193 = vcombine.high %v191, %v191
        %195 = vst [vmem:[%s151 + $0x20] sm:$0x7] %v191
        %196 = vst [vmem:[%s151 + $0x28] sm:$0x7] %v193
        %v197 = vld [vmem:[%s161] sm:$0xff]
        %v198 = vld [vmem:[%s161 + $0x8] sm:$0xff]
        %v199 = vld [vmem:[%s161 + $0x10] sm:$0x1f]
        %v200 = vld [vmem:[%s161 + $0x18] sm:$0x1f]
        %v205 = vrot.slane %v197, 5
        %v206 = vrot.slane %v198, 5
        %v207 = vrot.slane %v199, 5
        %v208 = vsel %vm176, %v205, %v207
        %v209 = vrot.slane %v200, 5
        %v210 = vsel %vm176, %v206, %v209
        %215 = vst [vmem:[%s151 + $0x20] sm:$0xf8] %v205
        %216 = vst [vmem:[%s151 + $0x28] sm:$0xf8] %v206
        %217 = vst [vmem:[%s151 + $0x30] sm:$0xff] %v208
        %218 = vst [vmem:[%s151 + $0x38] sm:$0xff] %v210
        %s219 = sand.u32 %s76, 1
        %s220 = scalar_lea.sflag [#allocation3], %s219
        %s221 = sand.u32 %s76, 1
        %s222 = smul.addr %s221, 64
        %s223 = scalar_lea.vmem [#allocation2], %s222
        // Predicated region
        $region29: #{tpu_custom_call.1} parent=27 // pred_check
          %p224 = pneg %p86
        $region30: #{tpu_custom_call.1} parent=27 // pred_check_branch
          %226 = sbr.rel (%p224) target = $region32
        $region31: #{tpu_custom_call.1} parent=27 // pred_region
          %s228 = ssub.s32 1024, 1024
          %229 = vsyncadd %s220, %s228
          %s230 = smul.addr %s16, 8
          %s231 = smul.addr %s230, 128
          %s232 = scalar_lea.hbm %s2, %s231
          %s233 = sshll.u32 %s223, 4
          %s234 = int_to_ptr.vmem [resolvable:$true] %s233
          %239 = dma.vmem_to_hbm [thread:$0]  %s234, 1024, %s232, %s220, 256, 256, 16
        $region32: #{tpu_custom_call.1} parent=27 // pred_fallthru
          _
      $region28: #{tpu_custom_call.1} parent=5 // pred_fallthru
        _
      %p240 = scmp.le.s32.totalorder 2, %s11
      // Predicated region
      $region33: #{tpu_custom_call.1} parent=5 // pred_check
        %p241 = pneg %p240
      $region34: #{tpu_custom_call.1} parent=5 // pred_check_branch
        %243 = sbr.rel (%p241) target = $region36
      $region35: #{tpu_custom_call.1} parent=5 // pred_region
        %s244 = ssub.s32 %s11, 2
        // Predicated region
        $region37: #{tpu_custom_call.1} parent=35 // pred_check
          %p245 = pneg %p92
        $region38: #{tpu_custom_call.1} parent=35 // pred_check_branch
          %247 = sbr.rel (%p245) target = $region40
        $region39: #{tpu_custom_call.1} parent=35 // pred_region
          %s248 = sand.u32 %s77, 1
          %s249 = scalar_lea.sflag [#allocation3], %s248
          %s250 = sand.u32 %s77, 1
          %s251 = smul.addr %s250, 64
          %s252 = scalar_lea.vmem [#allocation2], %s251
          %253 = dma.done %s249, 1024
        $region40: #{tpu_custom_call.1} parent=35 // pred_fallthru
          _
      $region36: #{tpu_custom_call.1} parent=5 // pred_fallthru
        _
    $region6: #{tpu_custom_call.1} parent=1 // loop_footer
      %s15 = sadd.s32 1, %s11
    $region7: #{tpu_custom_call.1} parent=1 // loop_footer_branch
      %10 = sbr.rel target = $region3
    $region8: #{tpu_custom_call.1} parent=1 // loop_exit
      _
    %254 = vsyncpa [#allocation3], 1
    %s255 = scalar_lea.sflag [#allocation3], 1
    %256 = vsyncpa %s255, 1

</llo_original>
